<compile_context>
chip_gen: v6e
topology: v6e:2x2x1
jax: 0.10.0
libtpu: 0.0.40
codegen_flags: <defaults>
</compile_context>

<pallas_src>
import jax
import jax.numpy as jnp
from jax.experimental import pallas as pl
from jax.experimental.pallas import tpu as pltpu

NUM_CLASSES = 2               # each backbone emits 2-class predictions
NUM_FEATS = 2 * NUM_CLASSES   # cat([img, txt], dim=1) width = 4
MLP_HIDDEN = 8                # nn.Linear(4, 8)
LANE_PAD = 128                # lane-dense padding for all kernel blocks


# ---------------------------------------------------------------------------
# Pallas kernels (one per fusion method)
# ---------------------------------------------------------------------------
def _weighted_sum_kernel(alpha_ref, xy_ref, out_ref):
    # alpha_ref: (1,1) f32 in SMEM (raw learnable scalar; sigmoid applied here
    # just like the torch forward).  xy_ref: (2, B, 128) f32 in VMEM.
    img = xy_ref[0]                                     # (B, 128)
    txt = xy_ref[1]                                     # (B, 128)
    a = jnp.broadcast_to(alpha_ref[0, 0], img.shape)    # scalar splat -> vreg
    gate = 1.0 / (1.0 + jnp.exp(-a))                    # EUP exp, VPU div
    out_ref[...] = gate * img + (1.0 - gate) * txt      # lane-dense store


def _concat_fusion_kernel(xy_ref, w_ref, b_ref, out_ref):
    # Linear(4, 2) on cat([img, txt]):  out = b + sum_k feat_k * W[k, :]
    # K=4 -> four f32 VPU broadcast-FMAs; no MXU, no bf16, no lane concat.
    img = xy_ref[0]                                     # (B, 128), lanes 0..1 live
    txt = xy_ref[1]
    out_ref[...] = (b_ref[...]
                    + img[:, 0:1] * w_ref[0:1, :]
                    + img[:, 1:2] * w_ref[1:2, :]
                    + txt[:, 0:1] * w_ref[2:3, :]
                    + txt[:, 1:2] * w_ref[3:4, :])      # (B, 128) f32


def _mlp_fusion_kernel(xy_ref, w1_ref, b1_ref, w2_ref, b2_ref, out_ref):
    img = xy_ref[0]                                     # (B, 128)
    txt = xy_ref[1]
    # Layer 1: Linear(4, 8) as four f32 VPU FMAs (hidden lives in lanes 0..7).
    h = (b1_ref[...]
         + img[:, 0:1] * w1_ref[0:1, :]
         + img[:, 1:2] * w1_ref[1:2, :]
         + txt[:, 0:1] * w1_ref[2:3, :]
         + txt[:, 1:2] * w1_ref[3:4, :])                # (B, 128) f32
    h = jnp.maximum(h, 0.0)                             # ReLU
    # TODO(synk): nn.Dropout(0.5) is identity at inference; training parity
    # would need an in-kernel mask via pltpu.prng_seed / prng_random_bits.
    # Layer 2: Linear(8, 2) as eight unrolled f32 VPU FMAs (w2 is only (8,128)).
    acc = jnp.broadcast_to(b2_ref[...], h.shape)        # (B, 128)
    for r in range(MLP_HIDDEN):
        acc = acc + h[:, r:r + 1] * w2_ref[r:r + 1, :]
    out_ref[...] = acc                                  # lane-dense store


def _avg_fusion_kernel(xy_ref, out_ref):
    out_ref[...] = (xy_ref[0] + xy_ref[1]) * 0.5


# ---------------------------------------------------------------------------
# Wrapper: dispatches on the (construction-time) fusion method
# ---------------------------------------------------------------------------
def _pack_inputs(img_preds, txt_preds):
    """Pack both (B, 2) predictions into one lane-dense (2, B, 128) f32 ref."""
    B = img_preds.shape[0]
    packed = jnp.zeros((2, B, LANE_PAD), jnp.float32)
    packed = packed.at[0, :, :NUM_CLASSES].set(img_preds.astype(jnp.float32))
    packed = packed.at[1, :, :NUM_CLASSES].set(txt_preds.astype(jnp.float32))
    return packed


def late_fusion_forward(img_preds, txt_preds, params, fusion_method="weighted_sum"):
    B = img_preds.shape[0]
    vmem = pl.BlockSpec(memory_space=pltpu.MemorySpace.VMEM)
    smem = pl.BlockSpec(memory_space=pltpu.MemorySpace.SMEM)
    out_shape = jax.ShapeDtypeStruct((B, LANE_PAD), jnp.float32)

    packed = _pack_inputs(img_preds, txt_preds)

    if fusion_method == "weighted_sum":
        out = pl.pallas_call(
            _weighted_sum_kernel,
            out_shape=out_shape,
            in_specs=[smem, vmem],
            out_specs=vmem,
        )(params["alpha"], packed)
    elif fusion_method == "concat":
        out = pl.pallas_call(
            _concat_fusion_kernel,
            out_shape=out_shape,
            in_specs=[vmem, vmem, vmem],
            out_specs=vmem,
        )(packed, params["w_cat"], params["b_cat"])
    elif fusion_method == "mlp":
        out = pl.pallas_call(
            _mlp_fusion_kernel,
            out_shape=out_shape,
            in_specs=[vmem, vmem, vmem, vmem, vmem],
            out_specs=vmem,
        )(packed, params["w1"], params["b1"], params["w2"], params["b2"])
    else:  # default branch: simple average
        out = pl.pallas_call(
            _avg_fusion_kernel,
            out_shape=out_shape,
            in_specs=[vmem],
            out_specs=vmem,
        )(packed)

    return out[:, :NUM_CLASSES]


# ---------------------------------------------------------------------------
# Parameter init (kernel layout: f32, lane-padded to 128; plus raw PyTorch
# layout copies used only by the pure-JAX reference)
# ---------------------------------------------------------------------------
def init_params(key):
    ks = jax.random.split(key, 6)

    def lin(k, fan_in, shape):
        bound = 1.0 / jnp.sqrt(fan_in)
        return jax.random.uniform(k, shape, jnp.float32, -bound, bound)

    # 'weighted_sum': raw scalar alpha = 0.5 (sigmoid applied in kernel)
    alpha = jnp.full((1, 1), 0.5, jnp.float32)

    # Raw (in, out)-layout weights, matching torch Linear's y = x @ W.T + b.
    w_cat = lin(ks[0], NUM_FEATS, (NUM_FEATS, NUM_CLASSES))
    b_cat = lin(ks[1], NUM_FEATS, (NUM_CLASSES,))
    w1 = lin(ks[2], NUM_FEATS, (NUM_FEATS, MLP_HIDDEN))
    b1 = lin(ks[3], NUM_FEATS, (MLP_HIDDEN,))
    w2 = lin(ks[4], MLP_HIDDEN, (MLP_HIDDEN, NUM_CLASSES))
    b2 = lin(ks[5], MLP_HIDDEN, (NUM_CLASSES,))

    def lane_pad(x, rows):
        out = jnp.zeros((rows, LANE_PAD), jnp.float32)
        return out.at[: x.shape[0], : x.shape[1]].set(x)

    return {
        "alpha": alpha,
        # kernel-layout (f32, lane-padded) params
        "w_cat": lane_pad(w_cat, NUM_FEATS),        # (4, 128)
        "b_cat": lane_pad(b_cat[None, :], 1),       # (1, 128)
        "w1":    lane_pad(w1, NUM_FEATS),           # (4, 128)
        "b1":    lane_pad(b1[None, :], 1),          # (1, 128)
        "w2":    lane_pad(w2, MLP_HIDDEN),          # (8, 128)
        "b2":    lane_pad(b2[None, :], 1),          # (1, 128)
        # raw params for the reference
        "w_cat_raw": w_cat, "b_cat_raw": b_cat,
        "w1_raw": w1, "b1_raw": b1, "w2_raw": w2, "b2_raw": b2,
    }


# ---------------------------------------------------------------------------
# Pure-JAX reference (mirrors the PyTorch module math, f32)
# ---------------------------------------------------------------------------
def reference_forward(img, txt, params, fusion_method):
    if fusion_method == "weighted_sum":
        a = jax.nn.sigmoid(params["alpha"][0, 0])
        return a * img + (1.0 - a) * txt
    if fusion_method == "concat":
        combined = jnp.concatenate([img, txt], axis=1)
        return combined @ params["w_cat_raw"] + params["b_cat_raw"]
    if fusion_method == "mlp":
        combined = jnp.concatenate([img, txt], axis=1)
        h = jnp.maximum(combined @ params["w1_raw"] + params["b1_raw"], 0.0)
        return h @ params["w2_raw"] + params["b2_raw"]
    return (img + txt) * 0.5


# ---------------------------------------------------------------------------
# Deterministic stub backbones (image_model / text_model are external modules;
# the fusion head only requires that each emits (B, 2) predictions).
# ---------------------------------------------------------------------------
def stub_image_model(image, w):
    B = image.shape[0]
    return jnp.tanh(image.reshape(B, -1) @ w)


def stub_text_model(input_ids, attention_mask, emb, w):
    e = emb[input_ids]                                    # (B, S, E)
    m = attention_mask[..., None].astype(jnp.float32)     # (B, S, 1)
    pooled = jnp.sum(e * m, axis=1) / jnp.maximum(jnp.sum(m, axis=1), 1.0)
    return pooled @ w


if __name__ == "__main__":
    key = jax.random.PRNGKey(0)
    k_img, k_ids, k_bw, k_emb, k_tw, k_params = jax.random.split(key, 6)

    B, C, H, W = 2, 3, 16, 16
    S, VOCAB, EMB = 8, 100, 32

    image = jax.random.normal(k_img, (B, C, H, W), jnp.float32)
    input_ids = jax.random.randint(k_ids, (B, S), 0, VOCAB)
    attention_mask = jnp.ones((B, S), jnp.int32)

    # stub backbone params
    backbone_w = jax.random.normal(k_bw, (C * H * W, NUM_CLASSES), jnp.float32) * 0.02
    emb_table = jax.random.normal(k_emb, (VOCAB, EMB), jnp.float32) * 0.5
    text_w = jax.random.normal(k_tw, (EMB, NUM_CLASSES), jnp.float32) * 0.5

    params = init_params(k_params)

    img_preds = stub_image_model(image, backbone_w)                             # (B, 2)
    txt_preds = stub_text_model(input_ids, attention_mask, emb_table, text_w)   # (B, 2)

    # default fusion method of the module is 'weighted_sum'; exercise all paths.
    for method in ("weighted_sum", "concat", "mlp", "average"):
        logits = late_fusion_forward(img_preds, txt_preds, params, method)
        jax.block_until_ready(logits)
        assert logits.shape == (B, NUM_CLASSES)
        ref = reference_forward(img_preds, txt_preds, params, method)
        assert jnp.allclose(logits, ref, rtol=1e-5, atol=1e-5), method

    print("KERNEL_OK")
</pallas_src>

<mosaic_0001>
module attributes {stable_mosaic.version = 11 : i64} {
  func.func @_weighted_sum_kernel(%arg0: memref<1x1xf32, #tpu.memory_space<smem>>, %arg1: memref<2x2x128xf32, #tpu.memory_space<vmem>>, %arg2: memref<2x128xf32, #tpu.memory_space<vmem>>) attributes {dimension_semantics = [], scalar_prefetch = 0 : i64, scratch_operands = 0 : i64, tpu.core_type = #tpu.core_type<tc>} {
    %c0 = arith.constant 0 : index
    %c0_0 = arith.constant 0 : index
    %c0_1 = arith.constant 0 : index
    %0 = vector.load %arg1[%c0, %c0_0, %c0_1] : memref<2x2x128xf32, #tpu.memory_space<vmem>>, vector<1x2x128xf32>
    %1 = vector.shape_cast %0 : vector<1x2x128xf32> to vector<2x128xf32>
    %c1 = arith.constant 1 : index
    %c0_2 = arith.constant 0 : index
    %c0_3 = arith.constant 0 : index
    %2 = vector.load %arg1[%c1, %c0_2, %c0_3] : memref<2x2x128xf32, #tpu.memory_space<vmem>>, vector<1x2x128xf32>
    %3 = vector.shape_cast %2 : vector<1x2x128xf32> to vector<2x128xf32>
    %c0_4 = arith.constant 0 : index
    %c0_5 = arith.constant 0 : index
    %4 = memref.load %arg0[%c0_4, %c0_5] : memref<1x1xf32, #tpu.memory_space<smem>>
    %5 = vector.broadcast %4 : f32 to vector<2x128xf32>
    %cst = arith.constant 0.000000e+00 : f32
    %6 = vector.broadcast %cst : f32 to vector<2x128xf32>
    %7 = arith.subf %6, %5 : vector<2x128xf32>
    %8 = math.exp %7 : vector<2x128xf32>
    %cst_6 = arith.constant 1.000000e+00 : f32
    %9 = vector.broadcast %cst_6 : f32 to vector<2x128xf32>
    %10 = arith.addf %9, %8 : vector<2x128xf32>
    %cst_7 = arith.constant 1.000000e+00 : f32
    %11 = vector.broadcast %cst_7 : f32 to vector<2x128xf32>
    %12 = arith.divf %11, %10 : vector<2x128xf32>
    %13 = arith.mulf %12, %1 : vector<2x128xf32>
    %cst_8 = arith.constant 1.000000e+00 : f32
    %14 = vector.broadcast %cst_8 : f32 to vector<2x128xf32>
    %15 = arith.subf %14, %12 : vector<2x128xf32>
    %16 = arith.mulf %15, %3 : vector<2x128xf32>
    %17 = arith.addf %13, %16 : vector<2x128xf32>
    %c0_9 = arith.constant 0 : index
    %c0_10 = arith.constant 0 : index
    %18 = vector.load %arg2[%c0_9, %c0_10] : memref<2x128xf32, #tpu.memory_space<vmem>>, vector<2x128xf32>
    tpu.vector_store %arg2[%c0_9, %c0_10], %17 {strides = array<i32>} : memref<2x128xf32, #tpu.memory_space<vmem>>, vector<2x128xf32>,
    return
  }
}

</mosaic_0001>

<llo_original>
// kernel: tpu_custom_call.1
$region0: #{tpu_custom_call.1}
  #allocation0 [shape = 'u32[]', space=smem, size = 0x4, offset = 0x4, fixed_abs, tag = 'smem constant byte address 0x4 - core index']
  #allocation1 [shape = 'u32[144,128]{1,0:T(1,128)}', space=vmem, size = 0x12000, scoped, tag = 'internal scratch']
  #allocation2 [shape = 'f32[1,1]{1,0:T(1,128)S(6)}', space=smem, size = 0x200, scoped, tag = 'scoped memory for tpu_custom_call.1']
  %s0 = inlined_call_operand.<no memory space> [shape: f32[1,1], index: 0, kind: input, shape index: {}]
  %s1 = inlined_call_operand.hbm [shape: f32[2,2,128], index: 1, kind: input, shape index: {}]
  %s2 = inlined_call_operand.hbm [shape: f32[2,128], index: 2, kind: output, shape index: {}]
  %s3 = sld [smem:[#allocation0]]
  $region22: #{tpu_custom_call.1} parent=0
    _
  %s5 = ssub.s32 1, %s3
  %s6 = scalar_select 0, %s5, %s3
  %7 = sst [smem:[#allocation2]] %s0
  $region1: #{tpu_custom_call.1} parent=0
    #allocation3 [shape = 'u8[2048]{0}', space=vmem, size = 0x800, scoped, tag = 'input window, operand 1, single buffered']
    #allocation4 [shape = 's32[1]{0}', space=sflag, size = 0x4, scoped, tag = 'scoped memory for tpu_custom_call.1']
    #allocation5 [shape = 's32[1]{0}', space=sflag, size = 0x4, scoped, tag = 'scoped memory for tpu_custom_call.1']
    #allocation6 [shape = 'u8[1024]{0}', space=vmem, size = 0x400, scoped, tag = 'output window, operand 0, single buffered']
    %8 = vsyncpa [#allocation4], 0
    %9 = vsyncpa [#allocation5], 0
    // Predicated region
    $region2: #{tpu_custom_call.1} parent=1 // pred_check
      _
    $region3: #{tpu_custom_call.1} parent=1 // pred_check_branch
      %11 = sbr.rel (0) target = $region5
    $region4: #{tpu_custom_call.1} parent=1 // pred_region
      _
    $region5: #{tpu_custom_call.1} parent=1 // pred_fallthru
      _
    // Predicated region
    $region6: #{tpu_custom_call.1} parent=1 // pred_check
      _
    $region7: #{tpu_custom_call.1} parent=1 // pred_check_branch
      %13 = sbr.rel (0) target = $region9
    $region8: #{tpu_custom_call.1} parent=1 // pred_region
      %s15 = ssub.s32 64, 64
      %16 = vsyncadd [#allocation4], %s15
      %s17 = sshll.u32 [#allocation3], 4
      %s18 = int_to_ptr.vmem [resolvable:$true] %s17
      %23 = dma.hbm_to_vmem [thread:$0]  %s1, 64, %s18, [#allocation4], 32, 32, 2
    $region9: #{tpu_custom_call.1} parent=1 // pred_fallthru
      _
    // Predicated region
    $region10: #{tpu_custom_call.1} parent=1 // pred_check
      _
    $region11: #{tpu_custom_call.1} parent=1 // pred_check_branch
      %25 = sbr.rel (0) target = $region13
    $region12: #{tpu_custom_call.1} parent=1 // pred_region
      %26 = dma.done [#allocation4], 64
    $region13: #{tpu_custom_call.1} parent=1 // pred_fallthru
      _
    %v27 = vld [vmem:[#allocation3] sm:$0x3]
    %s28 = scalar_lea.vmem [#allocation3], 2
    %v29 = vld [vmem:[%s28] sm:$0x3]
    %s30 = sld [smem:[#allocation2]]
    %v31 = vstv %s30
    %v32 = vsub.f32 0.0, %v31
    %v33 = vmul.f32 %v32, 1.442695
    %v34 = vpow.pop %v33
    %v35 = vadd.f32 %v34, 1.0
    %v36 = vrcp.pop %v35
    %v37 = vmul.f32 1.0, %v36
    %v38 = vmul.f32 %v37, %v27
    %v39 = vsub.f32 1.0, %v37
    %v40 = vmul.f32 %v39, %v29
    %v41 = vadd.f32 %v38, %v40
    %42 = vst [vmem:[#allocation6] sm:$0x3] %v41
    // Predicated region
    $region14: #{tpu_custom_call.1} parent=1 // pred_check
      _
    $region15: #{tpu_custom_call.1} parent=1 // pred_check_branch
      %44 = sbr.rel (0) target = $region17
    $region16: #{tpu_custom_call.1} parent=1 // pred_region
      %s46 = ssub.s32 32, 32
      %47 = vsyncadd [#allocation5], %s46
      %s49 = sshll.u32 [#allocation6], 4
      %s50 = int_to_ptr.vmem [resolvable:$true] %s49
      %52 = dma.vmem_to_hbm [thread:$0]  %s50, 32, %s2, [#allocation5]
    $region17: #{tpu_custom_call.1} parent=1 // pred_fallthru
      _
    // Predicated region
    $region18: #{tpu_custom_call.1} parent=1 // pred_check
      _
    $region19: #{tpu_custom_call.1} parent=1 // pred_check_branch
      %54 = sbr.rel (0) target = $region21
    $region20: #{tpu_custom_call.1} parent=1 // pred_region
      %55 = dma.done [#allocation5], 32
    $region21: #{tpu_custom_call.1} parent=1 // pred_fallthru
      _
    %56 = vsyncpa [#allocation4], 1
    %57 = vsyncpa [#allocation5], 1

</llo_original>
